<compile_context>
chip_gen: v7x
topology: tpu7x:2x2x1
jax: 0.10.0
libtpu: 0.0.40
codegen_flags: <defaults>
</compile_context>

<pallas_src>
import jax
import jax.numpy as jnp
from jax.experimental import pallas as pl
from jax.experimental.pallas import tpu as pltpu


def _mish_kernel(x_ref, o_ref):
    x = x_ref[...].astype(jnp.float32)
    # mish(x) = x * tanh(softplus(x)).  With w = exp(x):
    #   tanh(log1p(w)) = ((1+w)^2 - 1) / ((1+w)^2 + 1) = w*(w+2) / (w*(w+2) + 2)
    # -> one EUP exp + one EUP approx reciprocal instead of exp + log1p + tanh.
    w = jnp.exp(jnp.minimum(x, 20.0))          # clamp avoids overflow; branch below
    num = w * (w + 2.0)
    den = num + 2.0                            # den >= 2 -> no div-by-zero risk
    r = pl.reciprocal(den, approx=True)
    r = r * (2.0 - den * r)                    # one Newton step (VPU) -> ~exact 1/den
    t = num * r
    # Match torch.nn.functional.softplus threshold=20: softplus(x)=x for x>20,
    # and tanh(x) == 1.0 in f32 there, so mish(x) = x.
    y = jnp.where(x > 20.0, x, x * t)
    o_ref[...] = y.astype(o_ref.dtype)


def _mish_jnp(x):
    # Pure-JAX reference / tiny-tail fallback (matches torch mish semantics).
    xf = x.astype(jnp.float32)
    sp = jnp.where(xf > 20.0, xf, jnp.log1p(jnp.exp(jnp.minimum(xf, 20.0))))
    return (xf * jnp.tanh(sp)).astype(x.dtype)


def _num_tensorcores() -> int:
    """Best-effort TensorCores-per-chip (2 on v7x, 1 on v5e/v6e)."""
    try:
        info = pltpu.get_tpu_info()
        for attr in ("num_cores", "core_count", "num_tensorcores",
                     "tensorcores_per_chip"):
            v = getattr(info, attr, None)
            if isinstance(v, int) and v > 0:
                return v
    except Exception:
        pass
    try:
        kind = jax.devices()[0].device_kind.lower()
        if "7" in kind:                        # "TPU7x"
            return 2
    except Exception:
        pass
    return 1


def mish(x: jax.Array, *, target_block_bytes: int = 2 * 1024 * 1024) -> jax.Array:
    """Elementwise Mish via Pallas. Works for any input shape / float dtype."""
    orig_shape = x.shape
    dtype = x.dtype
    n = x.size
    if n == 0:
        return x

    itemsize = jnp.dtype(dtype).itemsize
    sublane = max(8, 32 // itemsize)           # 8 f32 / 16 bf16,f16 / 32 int8,fp8

    flat = x.reshape(-1)

    # Widest lane-dense last dim (multiple of 128) dividing n, preferring one
    # that yields at least `sublane` rows; else 128 + a small jnp-handled tail.
    lanes = 128
    for cand in (1024, 512, 256, 128):
        if n % cand == 0 and (n // cand) >= sublane:
            lanes = cand
            break
    else:
        for cand in (1024, 512, 256, 128):
            if n % cand == 0:
                lanes = cand
                break

    n_main = (n // lanes) * lanes
    tail = n - n_main                          # < lanes; nonzero only if n % 128 != 0

    if n_main == 0:
        # Tiny input (< 128 elements): not worth a kernel launch.
        return _mish_jnp(flat).reshape(orig_shape)

    rows = n_main // lanes

    # Byte-based block sizing: ~2 MiB per VMEM buffer independent of dtype.
    # in + out, double-buffered => ~8 MiB pipelined VMEM (fits v5e's 16 MiB
    # scoped default and v6e/v7x's 32 MiB).
    block_elems = max(sublane * lanes, target_block_bytes // itemsize)
    tile_cap = max(sublane, (block_elems // lanes) // sublane * sublane)

    num_tc = _num_tensorcores()
    grid_n = pl.cdiv(rows, tile_cap)
    if num_tc > 1 and rows >= num_tc * sublane:
        # Even split across TensorCores (v7x): grid_n a multiple of num_tc.
        grid_n = pl.cdiv(max(grid_n, num_tc), num_tc) * num_tc

    if grid_n <= 1:
        grid_n = 1
        tile = rows                            # full-array block; no rounding needed
    else:
        tile = pl.cdiv(pl.cdiv(rows, grid_n), sublane) * sublane
        grid_n = pl.cdiv(rows, tile)           # drop fully-empty trailing blocks
        # Ragged last block (if rows % tile != 0) is masked by Pallas: the
        # unspecified padded region is safe for this elementwise chain.

    x2d = (flat if tail == 0 else flat[:n_main]).reshape(rows, lanes)

    cost = pl.CostEstimate(
        flops=6 * n_main,
        transcendentals=2 * n_main,
        bytes_accessed=2 * n_main * itemsize,
    )

    out2d = pl.pallas_call(
        _mish_kernel,
        out_shape=jax.ShapeDtypeStruct((rows, lanes), dtype),
        grid_spec=pltpu.PrefetchScalarGridSpec(
            num_scalar_prefetch=0,
            grid=(grid_n,),
            in_specs=[pl.BlockSpec((tile, lanes), lambda i: (i, 0))],
            out_specs=pl.BlockSpec((tile, lanes), lambda i: (i, 0)),
        ),
        compiler_params=pltpu.CompilerParams(
            dimension_semantics=("parallel",),
        ),
        cost_estimate=cost,
        # TODO(synk): optionally add input_output_aliases={0: 0} when the
        # caller can donate x (minor allocator win, no bandwidth change).
    )(x2d)

    out_flat = out2d.reshape(-1)
    if tail:
        out_flat = jnp.concatenate([out_flat, _mish_jnp(flat[n_main:])])
    return out_flat.reshape(orig_shape)


if __name__ == "__main__":
    key = jax.random.PRNGKey(0)

    ok = True

    # Spec shape: NCHW (batch=2, C=4, H=16, W=16), f32.
    x = jax.random.normal(key, (2, 4, 16, 16), dtype=jnp.float32) * 3.0
    out = jax.block_until_ready(mish(x))
    ref = _mish_jnp(x)
    ok &= (out.shape == x.shape and out.dtype == x.dtype)
    ok &= bool(jnp.allclose(out, ref, atol=1e-4, rtol=1e-3))

    # Slightly larger input to exercise the multi-step pipelined grid path.
    key2 = jax.random.PRNGKey(1)
    x2 = jax.random.normal(key2, (16, 16, 64, 64), dtype=jnp.float32) * 3.0
    out2 = jax.block_until_ready(mish(x2))
    ref2 = _mish_jnp(x2)
    ok &= (out2.shape == x2.shape and out2.dtype == x2.dtype)
    ok &= bool(jnp.allclose(out2, ref2, atol=1e-4, rtol=1e-3))

    assert ok
    print("KERNEL_OK")
</pallas_src>

<mosaic_0001>
module attributes {stable_mosaic.version = 11 : i64} {
  func.func @_mish_kernel(%arg0: i32, %arg1: memref<8x256xf32, #tpu.memory_space<vmem>>, %arg2: memref<8x256xf32, #tpu.memory_space<vmem>>) attributes {dimension_semantics = [#tpu.dimension_semantics<parallel>], iteration_bounds = array<i64: 1>, scalar_prefetch = 0 : i64, scratch_operands = 0 : i64, tpu.core_type = #tpu.core_type<tc>, window_params = [{transform_indices = @transform_0, window_bounds = array<i64: 8, 256>}, {transform_indices = @transform_1, window_bounds = array<i64: 8, 256>}]} {
    %c0 = arith.constant 0 : index
    %c0_0 = arith.constant 0 : index
    %0 = vector.load %arg1[%c0, %c0_0] : memref<8x256xf32, #tpu.memory_space<vmem>>, vector<8x256xf32>
    %cst = arith.constant 2.000000e+01 : f32
    %1 = vector.broadcast %cst : f32 to vector<8x256xf32>
    %2 = arith.minimumf %0, %1 : vector<8x256xf32>
    %3 = math.exp %2 : vector<8x256xf32>
    %cst_1 = arith.constant 2.000000e+00 : f32
    %4 = vector.broadcast %cst_1 : f32 to vector<8x256xf32>
    %5 = arith.addf %3, %4 : vector<8x256xf32>
    %6 = arith.mulf %3, %5 : vector<8x256xf32>
    %cst_2 = arith.constant 2.000000e+00 : f32
    %7 = vector.broadcast %cst_2 : f32 to vector<8x256xf32>
    %8 = arith.addf %6, %7 : vector<8x256xf32>
    %9 = tpu.reciprocal %8 {approx = true} : vector<8x256xf32> -> vector<8x256xf32>
    %10 = arith.mulf %8, %9 : vector<8x256xf32>
    %cst_3 = arith.constant 2.000000e+00 : f32
    %11 = vector.broadcast %cst_3 : f32 to vector<8x256xf32>
    %12 = arith.subf %11, %10 : vector<8x256xf32>
    %13 = arith.mulf %9, %12 : vector<8x256xf32>
    %14 = arith.mulf %6, %13 : vector<8x256xf32>
    %cst_4 = arith.constant 2.000000e+01 : f32
    %15 = vector.broadcast %cst_4 : f32 to vector<8x256xf32>
    %16 = arith.cmpf ogt, %0, %15 : vector<8x256xf32>
    %17 = arith.mulf %0, %14 : vector<8x256xf32>
    %18 = arith.select %16, %0, %17 : vector<8x256xi1>, vector<8x256xf32>
    %c0_5 = arith.constant 0 : index
    %c0_6 = arith.constant 0 : index
    %19 = vector.load %arg2[%c0_5, %c0_6] : memref<8x256xf32, #tpu.memory_space<vmem>>, vector<8x256xf32>
    tpu.vector_store %arg2[%c0_5, %c0_6], %18 {strides = array<i32>} : memref<8x256xf32, #tpu.memory_space<vmem>>, vector<8x256xf32>,
    return
  }
  func.func @transform_0(%arg0: i32) -> (i32, i32) {
    %c0_i32 = arith.constant 0 : i32
    %c0_i32_0 = arith.constant 0 : i32
    return %arg0, %c0_i32 : i32, i32
  }
  func.func @transform_1(%arg0: i32) -> (i32, i32) {
    %c0_i32 = arith.constant 0 : i32
    %c0_i32_0 = arith.constant 0 : i32
    return %arg0, %c0_i32 : i32, i32
  }
}

</mosaic_0001>

<llo_original>
// kernel: tpu_custom_call.1
$region0: #{tpu_custom_call.1}
  #allocation0 [shape = 'u32[]', space=smem, size = 0x4, offset = 0x4, fixed_abs, tag = 'smem constant byte address 0x4 - core index']
  #allocation1 [shape = 'u32[144,128]{1,0:T(1,128)}', space=vmem, size = 0x12000, scoped, tag = 'internal scratch']
  %s0 = inlined_call_operand.hbm [shape: f32[8,256], index: 0, kind: input, shape index: {}]
  %s1 = inlined_call_operand.hbm [shape: f32[8,256], index: 1, kind: output, shape index: {}]
  %s2 = sld [smem:[#allocation0]]
  $region18: #{tpu_custom_call.1} parent=0
    _
  %s4 = ssub.s32 1, %s2
  %s5 = scalar_select 0, %s4, %s2
  $region1: #{tpu_custom_call.1} parent=0
    #allocation2 [shape = 'u8[8192]{0}', space=vmem, size = 0x2000, scoped, tag = 'input window, operand 0, single buffered']
    #allocation3 [shape = 's32[1]{0}', space=sflag, size = 0x4, scoped, tag = 'scoped memory for tpu_custom_call.1']
    #allocation4 [shape = 's32[1]{0}', space=sflag, size = 0x4, scoped, tag = 'scoped memory for tpu_custom_call.1']
    #allocation5 [shape = 'u8[8192]{0}', space=vmem, size = 0x2000, scoped, tag = 'output window, operand 0, single buffered']
    %6 = vsyncpa [#allocation3], 0
    %7 = vsyncpa [#allocation4], 0
    // Predicated region
    $region2: #{tpu_custom_call.1} parent=1 // pred_check
      _
    $region3: #{tpu_custom_call.1} parent=1 // pred_check_branch
      %9 = sbr.rel (0) target = $region5
    $region4: #{tpu_custom_call.1} parent=1 // pred_region
      %s11 = ssub.s32 256, 256
      %12 = vsyncadd [#allocation3], %s11
      %s14 = sshll.u32 [#allocation2], 4
      %s15 = int_to_ptr.vmem [resolvable:$true] %s14
      %17 = dma.hbm_to_vmem [thread:$0]  %s0, 256, %s15, [#allocation3]
    $region5: #{tpu_custom_call.1} parent=1 // pred_fallthru
      _
    // Predicated region
    $region6: #{tpu_custom_call.1} parent=1 // pred_check
      _
    $region7: #{tpu_custom_call.1} parent=1 // pred_check_branch
      %19 = sbr.rel (0) target = $region9
    $region8: #{tpu_custom_call.1} parent=1 // pred_region
      %20 = dma.done [#allocation3], 256
    $region9: #{tpu_custom_call.1} parent=1 // pred_fallthru
      _
    %v21 = vld [vmem:[#allocation2] sm:$0xff]
    %v22 = vld [vmem:[#allocation2 + $0x8] sm:$0xff]
    %v23 = vmin.f32 %v21, 20.0
    %v24 = vmin.f32 %v22, 20.0
    %v25 = vmul.f32 %v23, 1.442695
    %v26 = vpow.pop %v25
    %v27 = vmul.f32 %v24, 1.442695
    %v28 = vpow.pop %v27
    %v29 = vadd.f32 %v26, 2.0
    %v30 = vadd.f32 %v28, 2.0
    %v31 = vmul.f32 %v26, %v29
    %v32 = vmul.f32 %v28, %v30
    %v33 = vadd.f32 %v31, 2.0
    %v34 = vadd.f32 %v32, 2.0
    %v35 = vrcp.pop %v33
    %v36 = vrcp.pop %v34
    %v37 = vmul.f32 %v33, %v35
    %v38 = vmul.f32 %v34, %v36
    %v39 = vsub.f32 2.0, %v37
    %v40 = vsub.f32 2.0, %v38
    %v41 = vmul.f32 %v35, %v39
    %v42 = vmul.f32 %v36, %v40
    %v43 = vmul.f32 %v31, %v41
    %v44 = vmul.f32 %v32, %v42
    %vm45 = vcmp.gt.f32.partialorder %v21, 20.0
    %vm46 = vcmp.gt.f32.partialorder %v22, 20.0
    %v47 = vmul.f32 %v21, %v43
    %v48 = vmul.f32 %v22, %v44
    %v49 = vsel %vm45, %v21, %v47
    %v50 = vsel %vm46, %v22, %v48
    %51 = vst [vmem:[#allocation5] sm:$0xff] %v49
    %52 = vst [vmem:[#allocation5 + $0x8] sm:$0xff] %v50
    // Predicated region
    $region10: #{tpu_custom_call.1} parent=1 // pred_check
      _
    $region11: #{tpu_custom_call.1} parent=1 // pred_check_branch
      %54 = sbr.rel (0) target = $region13
    $region12: #{tpu_custom_call.1} parent=1 // pred_region
      %s56 = ssub.s32 256, 256
      %57 = vsyncadd [#allocation4], %s56
      %s59 = sshll.u32 [#allocation5], 4
      %s60 = int_to_ptr.vmem [resolvable:$true] %s59
      %62 = dma.vmem_to_hbm [thread:$0]  %s60, 256, %s1, [#allocation4]
    $region13: #{tpu_custom_call.1} parent=1 // pred_fallthru
      _
    // Predicated region
    $region14: #{tpu_custom_call.1} parent=1 // pred_check
      _
    $region15: #{tpu_custom_call.1} parent=1 // pred_check_branch
      %64 = sbr.rel (0) target = $region17
    $region16: #{tpu_custom_call.1} parent=1 // pred_region
      %65 = dma.done [#allocation4], 256
    $region17: #{tpu_custom_call.1} parent=1 // pred_fallthru
      _
    %66 = vsyncpa [#allocation3], 1
    %67 = vsyncpa [#allocation4], 1

</llo_original>
